<compile_context>
chip_gen: v6e
topology: v6e:2x2x1
jax: 0.10.0
libtpu: 0.0.40
codegen_flags: <defaults>
</compile_context>

<pallas_src>
import functools

import jax
import jax.numpy as jnp
from jax.experimental import pallas as pl
from jax.experimental.pallas import tpu as pltpu

BN_EPS = 1e-5


def _round_up(x, m):
    return (x + m - 1) // m * m


def _vmem_budget_bytes():
    """Per-generation VMEM budget with headroom for Mosaic internal scratch/semaphores."""
    try:
        cap = int(pltpu.get_tpu_info().vmem_capacity_bytes)
    except Exception:
        cap = 64 << 20                       # conservative fallback (safe on every generation)
    # ~48 MiB on v7x (64 MiB/TC), ~96 MiB on v5e/v6e (128 MiB/TC).
    return min(cap * 3 // 4, 100 << 20)


def _conv_tile(x_ref, w_ref, j, *, fold, num_taps, sc, row_tile):
    """(row_tile, C_out_pad) f32 bias-free conv tile for row-tile index j."""
    if fold:
        # x block is already the lane-folded (row_tile, num_taps*sc) tile for this grid step:
        # a single deep-K MXU matmul.
        return jnp.dot(x_ref[...], w_ref[...], preferred_element_type=jnp.float32)
    # Resident-slab path (sc >= 128): num_taps accumulated matmuls over row-shifted slices.
    row0 = pl.multiple_of(j * row_tile, row_tile)
    c_out_pad = w_ref.shape[-1]
    acc = jnp.zeros((row_tile, c_out_pad), jnp.float32)
    for a in range(num_taps):
        acc = acc + jnp.dot(x_ref[pl.ds(row0 + a, row_tile), :],
                            w_ref[pl.ds(a * sc, sc), :],
                            preferred_element_type=jnp.float32)
    return acc


def _stats_kernel(x_ref, w_ref, sum_ref, sumsq_ref, *y_cache_ref,
                  fold, num_taps, sc, row_tile, l_out, cache_conv):
    """Pass 1: per-batch partial sum / sum-of-squares of the bias-free conv output."""
    j = pl.program_id(1)

    @pl.when(j == 0)
    def _init():
        sum_ref[...] = jnp.zeros_like(sum_ref)
        sumsq_ref[...] = jnp.zeros_like(sumsq_ref)

    z = _conv_tile(x_ref, w_ref, j, fold=fold, num_taps=num_taps, sc=sc, row_tile=row_tile)

    if cache_conv:
        y_cache_ref[0][...] = z.astype(y_cache_ref[0].dtype)

    # Mask rows >= L_out (tile padding) so they do not pollute the batch statistics.
    rows = j * row_tile + jax.lax.broadcasted_iota(jnp.int32, (row_tile, 1), 0)
    zv = jnp.where(rows < l_out, z, 0.0)
    sum_ref[...] += jnp.sum(zv, axis=0, keepdims=True)
    sumsq_ref[...] += jnp.sum(zv * zv, axis=0, keepdims=True)


def _finalize_conv_kernel(x_ref, w_ref, scale_ref, shift_ref, o_ref, *,
                          fold, num_taps, sc, row_tile):
    """Pass 2 (recompute variant): conv tile, folded BN scale/shift, ReLU, lane-dense store."""
    j = pl.program_id(1)
    z = _conv_tile(x_ref, w_ref, j, fold=fold, num_taps=num_taps, sc=sc, row_tile=row_tile)
    y = z * scale_ref[...] + shift_ref[...]
    o_ref[...] = jnp.maximum(y, 0.0).astype(o_ref.dtype)


def _finalize_cached_kernel(y_ref, scale_ref, shift_ref, o_ref):
    """Pass 2 (cached variant): pure scale/shift + ReLU on the conv tiles written by pass 1."""
    y = y_ref[...].astype(jnp.float32) * scale_ref[...] + shift_ref[...]
    o_ref[...] = jnp.maximum(y, 0.0).astype(o_ref.dtype)


@functools.partial(
    jax.jit,
    static_argnames=("kernel", "stride", "padding", "row_tile", "matmul_dtype",
                     "out_dtype", "out_layout", "cache_conv"))
def conv1d_block(x, weight, bias, gamma, beta, *, kernel, stride=1, padding=0,
                 row_tile=256, matmul_dtype=jnp.float32, out_dtype=None,
                 out_layout="ncl", cache_conv=None):
    """Forward of Conv1dBlock.

    x:      (N, C_in, L)      f32
    weight: (C_out, C_in, K)  f32  (PyTorch Conv1d layout)
    bias, gamma, beta: (C_out,)
    returns (N, C_out, L_out)  (or (N, L_out, C_out) with out_layout="nlc")

    Note: `row_tile` can be raised to 512 on v5e/v6e (128 MiB VMEM) for slightly better
    per-grid-step amortization; 256 is a safe default that also fits v7x.
    """
    n, c_in, length = x.shape
    c_out = weight.shape[0]
    if out_dtype is None:
        out_dtype = jnp.float32

    l_out = (length + 2 * padding - kernel) // stride + 1
    num_taps = (kernel - 1) // stride + 1          # distinct row shifts after folding stride

    c_in_pad = _round_up(c_in, 8)                  # contraction sublane alignment
    c_out_pad = _round_up(c_out, 128)              # output lane dim -> unmasked stores
    sc = stride * c_in_pad                         # lanes of the stride-folded input slab
    kc = num_taps * sc                             # full contraction depth when taps are folded

    tl = min(_round_up(row_tile, 8), _round_up(l_out, 8))   # row tile (multiple of 8)
    l_out_pad = _round_up(l_out, tl)
    n_row_tiles = l_out_pad // tl
    lq_pad = _round_up(l_out_pad + num_taps - 1, 8)         # slab rows incl. tap halo
    total_rows = lq_pad * stride

    vmem_budget = _vmem_budget_bytes()
    itemsize = jnp.dtype(matmul_dtype).itemsize
    resident_bytes = 2 * lq_pad * sc * itemsize             # double-buffered resident x slab
    # Fold taps into lanes when lanes are under-filled (sc < 128) or when the resident slab
    # would blow the per-generation VMEM budget (v7x long-L case) -> L-tiled, pipelined blocks.
    fold = (num_taps == 1) or (sc < 128) or (resident_bytes > vmem_budget // 2)

    if cache_conv is None:
        # Cache the conv output only when the contraction is deep enough to be MXU-bound;
        # otherwise recomputing the conv in pass 2 is cheaper than a y HBM round-trip.
        cache_conv = kc >= max(c_out_pad, 256)

    # ---- input: NCL -> NLC (channels on lanes), conv zero-pad, channel pad, fold stride ----
    x_nlc = jnp.transpose(x, (0, 2, 1))                                   # (N, L, C_in)
    x_nlc = jnp.pad(x_nlc, ((0, 0), (padding, padding), (0, c_in_pad - c_in)))
    cur = length + 2 * padding
    if total_rows >= cur:
        x_nlc = jnp.pad(x_nlc, ((0, 0), (0, total_rows - cur), (0, 0)))
    else:                                                                 # trailing rows unused
        x_nlc = x_nlc[:, :total_rows, :]
    # x_q[n, q, s*C_in_pad + c] = x_pad[n, q*stride + s, c]
    x_q = x_nlc.reshape(n, lq_pad, sc).astype(matmul_dtype)

    if fold:
        if num_taps == 1:
            x_mm = x_q[:, :l_out_pad, :]                                  # (N, L_out_pad, kc)
        else:
            # Fold taps into lanes: x_mm[n, q, a*sc + t] = x_q[n, q + a, t].
            x_mm = jnp.concatenate(
                [x_q[:, a:a + l_out_pad, :] for a in range(num_taps)], axis=-1)
    else:
        x_mm = x_q                                                        # (N, lq_pad, sc)

    # ---- weights: (C_out, C_in, K) -> flat (num_taps*sc, C_out_pad) slab ----
    w_t = jnp.transpose(weight, (2, 1, 0))                                # (K, C_in, C_out)
    w_t = jnp.pad(w_t, ((0, num_taps * stride - kernel),
                        (0, c_in_pad - c_in), (0, c_out_pad - c_out)))
    w_mm = w_t.reshape(kc, c_out_pad).astype(matmul_dtype)

    g2d = jnp.pad(gamma.reshape(1, c_out), ((0, 0), (0, c_out_pad - c_out)))
    be2d = jnp.pad(beta.reshape(1, c_out), ((0, 0), (0, c_out_pad - c_out)))

    # ---- block specs ----
    if fold:
        x_spec = pl.BlockSpec((None, tl, kc), lambda ni, j: (ni, j, 0))   # L-tiled, pipelined
    else:
        x_spec = pl.BlockSpec((None, lq_pad, sc), lambda ni, j: (ni, 0, 0))  # resident per batch
    w_spec = pl.BlockSpec((kc, c_out_pad), lambda ni, j: (0, 0))
    vec_spec = pl.BlockSpec((1, c_out_pad), lambda ni, j: (0, 0))
    part_spec = pl.BlockSpec((None, 1, c_out_pad), lambda ni, j: (ni, 0, 0))
    tile_spec = pl.BlockSpec((None, tl, c_out_pad), lambda ni, j: (ni, j, 0))

    # ---- pass 1: per-batch partial statistics (megacore over N, accumulate over L tiles) ----
    stats_kernel = functools.partial(
        _stats_kernel, fold=fold, num_taps=num_taps, sc=sc, row_tile=tl,
        l_out=l_out, cache_conv=cache_conv)
    stats_out_specs = [part_spec, part_spec]
    stats_out_shape = [jax.ShapeDtypeStruct((n, 1, c_out_pad), jnp.float32),
                       jax.ShapeDtypeStruct((n, 1, c_out_pad), jnp.float32)]
    if cache_conv:
        stats_out_specs.append(tile_spec)
        stats_out_shape.append(jax.ShapeDtypeStruct((n, l_out_pad, c_out_pad), jnp.float32))

    stats = pl.pallas_call(
        stats_kernel,
        grid=(n, n_row_tiles),
        in_specs=[x_spec, w_spec],
        out_specs=stats_out_specs,
        out_shape=stats_out_shape,
        compiler_params=pltpu.CompilerParams(
            dimension_semantics=("parallel", "arbitrary"),
            vmem_limit_bytes=vmem_budget),
    )(x_mm, w_mm)
    if cache_conv:
        psum, psumsq, y_cache = stats
    else:
        psum, psumsq = stats

    # ---- fold BN (training-mode biased stats) + affine into per-channel scale/shift ----
    m_total = n * l_out
    mean_z = jnp.sum(psum, axis=0) / m_total                              # (1, C_out_pad)
    var = jnp.maximum(jnp.sum(psumsq, axis=0) / m_total - mean_z * mean_z, 0.0)
    inv_std = jax.lax.rsqrt(var + BN_EPS)
    scale = g2d * inv_std
    # Conv bias cancels exactly in training-mode BatchNorm: (z + b) - mean(z + b) = z - mean(z),
    # so `bias` never enters the kernels (kept as an argument for API parity).
    shift = be2d - mean_z * scale

    # ---- pass 2: scale/shift + ReLU (recompute conv or read cached y), lane-dense tiles ----
    if cache_conv:
        fin_kernel = _finalize_cached_kernel
        fin_in_specs = [tile_spec, vec_spec, vec_spec]
        fin_args = (y_cache, scale, shift)
    else:
        fin_kernel = functools.partial(
            _finalize_conv_kernel, fold=fold, num_taps=num_taps, sc=sc, row_tile=tl)
        fin_in_specs = [x_spec, w_spec, vec_spec, vec_spec]
        fin_args = (x_mm, w_mm, scale, shift)

    out_nlc = pl.pallas_call(
        fin_kernel,
        grid=(n, n_row_tiles),
        in_specs=fin_in_specs,
        out_specs=tile_spec,
        out_shape=jax.ShapeDtypeStruct((n, l_out_pad, c_out_pad), out_dtype),
        compiler_params=pltpu.CompilerParams(
            dimension_semantics=("parallel", "parallel"),     # megacore sharding on v7x
            vmem_limit_bytes=vmem_budget),
    )(*fin_args)

    out_nlc = out_nlc[:, :l_out, :c_out]
    if out_layout == "nlc":
        return out_nlc
    # Only to match PyTorch's (N, C_out, L_out) contract; NLC consumers should pass "nlc".
    # TODO(synk): for NCL consumers an in-kernel (tl, C)->(C, tl) tile transpose on the idle
    #             XLU would avoid this extra full-output HBM pass.
    return jnp.transpose(out_nlc, (0, 2, 1))


def _reference(x, weight, bias, gamma, beta, kernel, stride, padding):
    """Pure-JAX reference mirroring PyTorch Conv1d + BatchNorm1d(train) + ReLU."""
    y = jax.lax.conv_general_dilated(
        x, weight,
        window_strides=(stride,),
        padding=[(padding, padding)],
        dimension_numbers=("NCH", "OIH", "NCH"),
    ) + bias[None, :, None]
    mean = jnp.mean(y, axis=(0, 2), keepdims=True)
    var = jnp.mean((y - mean) ** 2, axis=(0, 2), keepdims=True)
    y = (y - mean) / jnp.sqrt(var + BN_EPS)
    y = y * gamma[None, :, None] + beta[None, :, None]
    return jnp.maximum(y, 0.0)


if __name__ == "__main__":
    def run_case(name, n, c_in, length, c_out, kernel, stride, padding, *,
                 matmul_dtype=jnp.float32, out_dtype=None, out_layout="ncl",
                 cache_conv=None, tol=1e-3):
        key = jax.random.PRNGKey(0)
        kx, kw, kb, kg, kbe = jax.random.split(key, 5)
        x = jax.random.normal(kx, (n, c_in, length), dtype=jnp.float32)
        weight = 0.1 * jax.random.normal(kw, (c_out, c_in, kernel), dtype=jnp.float32)
        bias = 0.1 * jax.random.normal(kb, (c_out,), dtype=jnp.float32)
        gamma = 1.0 + 0.1 * jax.random.normal(kg, (c_out,), dtype=jnp.float32)
        beta = 0.1 * jax.random.normal(kbe, (c_out,), dtype=jnp.float32)

        out = conv1d_block(x, weight, bias, gamma, beta, kernel=kernel, stride=stride,
                           padding=padding, matmul_dtype=matmul_dtype, out_dtype=out_dtype,
                           out_layout=out_layout, cache_conv=cache_conv)
        out = jax.block_until_ready(out)

        l_out = (length + 2 * padding - kernel) // stride + 1
        if out_layout == "nlc":
            assert out.shape == (n, l_out, c_out), (name, out.shape)
            out = jnp.transpose(out, (0, 2, 1))
        else:
            assert out.shape == (n, c_out, l_out), (name, out.shape)
        out = out.astype(jnp.float32)

        ref = _reference(x, weight, bias, gamma, beta, kernel, stride, padding)
        err = float(jnp.max(jnp.abs(out - ref)))
        assert jnp.allclose(out, ref, rtol=tol, atol=tol), (name, err)

    # Base config from the module (kernel=3, stride=1, padding=1): lane-folded single-dot path.
    run_case("base_k3_s1_p1", 2, 4, 16, 8, 3, 1, 1)
    # Unaligned channels / length: channel padding + row-masked statistics.
    run_case("odd_shapes_k5", 2, 3, 20, 5, 5, 1, 2)
    # Strided conv: stride folding + tap folding combined.
    run_case("strided_k3_s2", 2, 4, 16, 8, 3, 2, 2)
    # Large C_in (sc >= 128): resident-slab + tap-loop path with conv recompute in pass 2.
    run_case("resident_cin128", 2, 128, 24, 8, 3, 1, 1, cache_conv=False)
    # Auto cache-y (deep contraction): pass 1 writes y tiles, pass 2 is pure scale/shift+ReLU.
    run_case("resident_cached_auto", 2, 256, 24, 8, 3, 1, 1)
    # Forced cache-y on the folded path.
    run_case("cached_y_forced", 2, 4, 16, 8, 3, 1, 1, cache_conv=True)
    # bf16 matmul operands (MXU fast path); accumulation and BN/ReLU math stay f32.
    run_case("bf16_matmul", 2, 4, 16, 8, 3, 1, 1, matmul_dtype=jnp.bfloat16, tol=5e-2)
    # Channels-last output + bf16 store: skips the NCL transpose, halves epilogue HBM writes.
    run_case("nlc_bf16_out", 2, 4, 16, 8, 3, 1, 1, out_dtype=jnp.bfloat16,
             out_layout="nlc", tol=2e-2)

    print("KERNEL_OK")
</pallas_src>

<mosaic_0001>
module attributes {stable_mosaic.version = 11 : i64} {
  func.func @_stats_kernel(%arg0: i32, %arg1: i32, %arg2: memref<1x16x24xf32, #tpu.memory_space<vmem>>, %arg3: memref<24x128xf32, #tpu.memory_space<vmem>>, %arg4: memref<1x1x128xf32, #tpu.memory_space<vmem>>, %arg5: memref<1x1x128xf32, #tpu.memory_space<vmem>>) attributes {dimension_semantics = [#tpu.dimension_semantics<parallel>, #tpu.dimension_semantics<arbitrary>], iteration_bounds = array<i64: 2, 1>, scalar_prefetch = 0 : i64, scratch_operands = 0 : i64, tpu.core_type = #tpu.core_type<tc>, window_params = [{transform_indices = @transform_0, window_bounds = array<i64: 1, 16, 24>}, {pipeline_mode = #tpu.pipeline_mode<synchronous>, transform_indices = @transform_1, window_bounds = array<i64: 24, 128>}, {transform_indices = @transform_2, window_bounds = array<i64: 1, 1, 128>}, {transform_indices = @transform_3, window_bounds = array<i64: 1, 1, 128>}]} {
    %c0_i32 = arith.constant 0 : i32
    %0 = arith.cmpi eq, %arg1, %c0_i32 : i32
    %1 = arith.extui %0 : i1 to i32
    %c0_i32_0 = arith.constant 0 : i32
    %2 = arith.cmpi ne, %1, %c0_i32_0 : i32
    scf.if %2 {
      %cst_21 = arith.constant 0.000000e+00 : f32
      %34 = vector.broadcast %cst_21 : f32 to vector<1x128xf32>
      %c0_22 = arith.constant 0 : index
      %c0_23 = arith.constant 0 : index
      %c0_24 = arith.constant 0 : index
      %35 = vector.load %arg4[%c0_22, %c0_23, %c0_24] : memref<1x1x128xf32, #tpu.memory_space<vmem>>, vector<1x1x128xf32>
      %36 = vector.shape_cast %35 : vector<1x1x128xf32> to vector<1x128xf32>
      %37 = vector.shape_cast %34 : vector<1x128xf32> to vector<1x1x128xf32>
      tpu.vector_store %arg4[%c0_22, %c0_23, %c0_24], %37 {strides = array<i32>} : memref<1x1x128xf32, #tpu.memory_space<vmem>>, vector<1x1x128xf32>,
      %cst_25 = arith.constant 0.000000e+00 : f32
      %38 = vector.broadcast %cst_25 : f32 to vector<1x128xf32>
      %c0_26 = arith.constant 0 : index
      %c0_27 = arith.constant 0 : index
      %c0_28 = arith.constant 0 : index
      %39 = vector.load %arg5[%c0_26, %c0_27, %c0_28] : memref<1x1x128xf32, #tpu.memory_space<vmem>>, vector<1x1x128xf32>
      %40 = vector.shape_cast %39 : vector<1x1x128xf32> to vector<1x128xf32>
      %41 = vector.shape_cast %38 : vector<1x128xf32> to vector<1x1x128xf32>
      tpu.vector_store %arg5[%c0_26, %c0_27, %c0_28], %41 {strides = array<i32>} : memref<1x1x128xf32, #tpu.memory_space<vmem>>, vector<1x1x128xf32>,
    } else {
    }
    %c0 = arith.constant 0 : index
    %c0_1 = arith.constant 0 : index
    %c0_2 = arith.constant 0 : index
    %3 = vector.load %arg2[%c0, %c0_1, %c0_2] : memref<1x16x24xf32, #tpu.memory_space<vmem>>, vector<1x16x24xf32>
    %4 = vector.shape_cast %3 : vector<1x16x24xf32> to vector<16x24xf32>
    %c0_3 = arith.constant 0 : index
    %c0_4 = arith.constant 0 : index
    %5 = vector.load %arg3[%c0_3, %c0_4] : memref<24x128xf32, #tpu.memory_space<vmem>>, vector<24x128xf32>
    %cst = arith.constant dense<0.000000e+00> : vector<16x128xf32>
    %6 = tpu.matmul %4, %5, %cst {dimension_numbers = #tpu.dot_dimension_numbers<[1], [0], [0], [1], [0, 0, 1, 1], [], []>} : vector<16x24xf32>, vector<24x128xf32>, vector<16x128xf32> -> vector<16x128xf32>
    %c16_i32 = arith.constant 16 : i32
    %7 = arith.muli %arg1, %c16_i32 : i32
    %8 = tpu.iota {dimensions = array<i32: 0>} : vector<16x1xi32>
    %9 = vector.broadcast %7 : i32 to vector<16x1xi32>
    %10 = arith.addi %9, %8 : vector<16x1xi32>
    %c16_i32_5 = arith.constant 16 : i32
    %11 = vector.broadcast %c16_i32_5 : i32 to vector<16x1xi32>
    %12 = arith.cmpi slt, %10, %11 : vector<16x1xi32>
    %cst_6 = arith.constant 0.000000e+00 : f32
    %13 = vector.shape_cast %12 : vector<16x1xi1> to vector<16x1xi1>
    %14 = vector.broadcast %13 : vector<16x1xi1> to vector<16x128xi1>
    %15 = vector.broadcast %cst_6 : f32 to vector<16x128xf32>
    %16 = arith.select %14, %6, %15 : vector<16x128xi1>, vector<16x128xf32>
    %c0_7 = arith.constant 0 : index
    %c0_8 = arith.constant 0 : index
    %c0_9 = arith.constant 0 : index
    %17 = vector.load %arg4[%c0_7, %c0_8, %c0_9] : memref<1x1x128xf32, #tpu.memory_space<vmem>>, vector<1x1x128xf32>
    %18 = vector.shape_cast %17 : vector<1x1x128xf32> to vector<1x128xf32>
    %cst_10 = arith.constant dense<0.000000e+00> : vector<128xf32>
    %19 = vector.multi_reduction <add>, %16, %cst_10 [0] : vector<16x128xf32> to vector<128xf32>
    %20 = vector.shape_cast %19 : vector<128xf32> to vector<1x128xf32>
    %21 = arith.addf %18, %20 : vector<1x128xf32>
    %c0_11 = arith.constant 0 : index
    %c0_12 = arith.constant 0 : index
    %c0_13 = arith.constant 0 : index
    %22 = vector.load %arg4[%c0_11, %c0_12, %c0_13] : memref<1x1x128xf32, #tpu.memory_space<vmem>>, vector<1x1x128xf32>
    %23 = vector.shape_cast %22 : vector<1x1x128xf32> to vector<1x128xf32>
    %24 = vector.shape_cast %21 : vector<1x128xf32> to vector<1x1x128xf32>
    tpu.vector_store %arg4[%c0_11, %c0_12, %c0_13], %24 {strides = array<i32>} : memref<1x1x128xf32, #tpu.memory_space<vmem>>, vector<1x1x128xf32>,
    %c0_14 = arith.constant 0 : index
    %c0_15 = arith.constant 0 : index
    %c0_16 = arith.constant 0 : index
    %25 = vector.load %arg5[%c0_14, %c0_15, %c0_16] : memref<1x1x128xf32, #tpu.memory_space<vmem>>, vector<1x1x128xf32>
    %26 = vector.shape_cast %25 : vector<1x1x128xf32> to vector<1x128xf32>
    %27 = arith.mulf %16, %16 : vector<16x128xf32>
    %cst_17 = arith.constant dense<0.000000e+00> : vector<128xf32>
    %28 = vector.multi_reduction <add>, %27, %cst_17 [0] : vector<16x128xf32> to vector<128xf32>
    %29 = vector.shape_cast %28 : vector<128xf32> to vector<1x128xf32>
    %30 = arith.addf %26, %29 : vector<1x128xf32>
    %c0_18 = arith.constant 0 : index
    %c0_19 = arith.constant 0 : index
    %c0_20 = arith.constant 0 : index
    %31 = vector.load %arg5[%c0_18, %c0_19, %c0_20] : memref<1x1x128xf32, #tpu.memory_space<vmem>>, vector<1x1x128xf32>
    %32 = vector.shape_cast %31 : vector<1x1x128xf32> to vector<1x128xf32>
    %33 = vector.shape_cast %30 : vector<1x128xf32> to vector<1x1x128xf32>
    tpu.vector_store %arg5[%c0_18, %c0_19, %c0_20], %33 {strides = array<i32>} : memref<1x1x128xf32, #tpu.memory_space<vmem>>, vector<1x1x128xf32>,
    return
  }
  func.func @transform_0(%arg0: i32, %arg1: i32) -> (i32, i32, i32) {
    %c0_i32 = arith.constant 0 : i32
    %c0_i32_0 = arith.constant 0 : i32
    return %arg0, %arg1, %c0_i32 : i32, i32, i32
  }
  func.func @transform_1(%arg0: i32, %arg1: i32) -> (i32, i32) {
    %c0_i32 = arith.constant 0 : i32
    %c0_i32_0 = arith.constant 0 : i32
    %c0_i32_1 = arith.constant 0 : i32
    return %c0_i32, %c0_i32_0 : i32, i32
  }
  func.func @transform_2(%arg0: i32, %arg1: i32) -> (i32, i32, i32) {
    %c0_i32 = arith.constant 0 : i32
    %c0_i32_0 = arith.constant 0 : i32
    %c0_i32_1 = arith.constant 0 : i32
    return %arg0, %c0_i32, %c0_i32_0 : i32, i32, i32
  }
  func.func @transform_3(%arg0: i32, %arg1: i32) -> (i32, i32, i32) {
    %c0_i32 = arith.constant 0 : i32
    %c0_i32_0 = arith.constant 0 : i32
    %c0_i32_1 = arith.constant 0 : i32
    return %arg0, %c0_i32, %c0_i32_0 : i32, i32, i32
  }
}

module attributes {stable_mosaic.version = 11 : i64} {
  func.func @_finalize_conv_kernel(%arg0: i32, %arg1: i32, %arg2: memref<1x16x24xf32, #tpu.memory_space<vmem>>, %arg3: memref<24x128xf32, #tpu.memory_space<vmem>>, %arg4: memref<1x128xf32, #tpu.memory_space<vmem>>, %arg5: memref<1x128xf32, #tpu.memory_space<vmem>>, %arg6: memref<1x16x128xf32, #tpu.memory_space<vmem>>) attributes {dimension_semantics = [#tpu.dimension_semantics<parallel>, #tpu.dimension_semantics<parallel>], iteration_bounds = array<i64: 2, 1>, scalar_prefetch = 0 : i64, scratch_operands = 0 : i64, tpu.core_type = #tpu.core_type<tc>, window_params = [{transform_indices = @transform_0, window_bounds = array<i64: 1, 16, 24>}, {pipeline_mode = #tpu.pipeline_mode<synchronous>, transform_indices = @transform_1, window_bounds = array<i64: 24, 128>}, {pipeline_mode = #tpu.pipeline_mode<synchronous>, transform_indices = @transform_2, window_bounds = array<i64: 1, 128>}, {pipeline_mode = #tpu.pipeline_mode<synchronous>, transform_indices = @transform_3, window_bounds = array<i64: 1, 128>}, {transform_indices = @transform_4, window_bounds = array<i64: 1, 16, 128>}]} {
    %c0 = arith.constant 0 : index
    %c0_0 = arith.constant 0 : index
    %c0_1 = arith.constant 0 : index
    %0 = vector.load %arg2[%c0, %c0_0, %c0_1] : memref<1x16x24xf32, #tpu.memory_space<vmem>>, vector<1x16x24xf32>
    %1 = vector.shape_cast %0 : vector<1x16x24xf32> to vector<16x24xf32>
    %c0_2 = arith.constant 0 : index
    %c0_3 = arith.constant 0 : index
    %2 = vector.load %arg3[%c0_2, %c0_3] : memref<24x128xf32, #tpu.memory_space<vmem>>, vector<24x128xf32>
    %cst = arith.constant dense<0.000000e+00> : vector<16x128xf32>
    %3 = tpu.matmul %1, %2, %cst {dimension_numbers = #tpu.dot_dimension_numbers<[1], [0], [0], [1], [0, 0, 1, 1], [], []>} : vector<16x24xf32>, vector<24x128xf32>, vector<16x128xf32> -> vector<16x128xf32>
    %c0_4 = arith.constant 0 : index
    %c0_5 = arith.constant 0 : index
    %4 = vector.load %arg4[%c0_4, %c0_5] : memref<1x128xf32, #tpu.memory_space<vmem>>, vector<1x128xf32>
    %5 = vector.broadcast %4 : vector<1x128xf32> to vector<16x128xf32>
    %6 = arith.mulf %3, %5 : vector<16x128xf32>
    %c0_6 = arith.constant 0 : index
    %c0_7 = arith.constant 0 : index
    %7 = vector.load %arg5[%c0_6, %c0_7] : memref<1x128xf32, #tpu.memory_space<vmem>>, vector<1x128xf32>
    %8 = vector.broadcast %7 : vector<1x128xf32> to vector<16x128xf32>
    %9 = arith.addf %6, %8 : vector<16x128xf32>
    %cst_8 = arith.constant 0.000000e+00 : f32
    %10 = vector.broadcast %cst_8 : f32 to vector<16x128xf32>
    %11 = arith.maximumf %9, %10 : vector<16x128xf32>
    %c0_9 = arith.constant 0 : index
    %c0_10 = arith.constant 0 : index
    %c0_11 = arith.constant 0 : index
    %12 = vector.load %arg6[%c0_9, %c0_10, %c0_11] : memref<1x16x128xf32, #tpu.memory_space<vmem>>, vector<1x16x128xf32>
    %13 = vector.shape_cast %12 : vector<1x16x128xf32> to vector<16x128xf32>
    %14 = vector.shape_cast %11 : vector<16x128xf32> to vector<1x16x128xf32>
    tpu.vector_store %arg6[%c0_9, %c0_10, %c0_11], %14 {strides = array<i32>} : memref<1x16x128xf32, #tpu.memory_space<vmem>>, vector<1x16x128xf32>,
    return
  }
  func.func @transform_0(%arg0: i32, %arg1: i32) -> (i32, i32, i32) {
    %c0_i32 = arith.constant 0 : i32
    %c0_i32_0 = arith.constant 0 : i32
    return %arg0, %arg1, %c0_i32 : i32, i32, i32
  }
  func.func @transform_1(%arg0: i32, %arg1: i32) -> (i32, i32) {
    %c0_i32 = arith.constant 0 : i32
    %c0_i32_0 = arith.constant 0 : i32
    %c0_i32_1 = arith.constant 0 : i32
    return %c0_i32, %c0_i32_0 : i32, i32
  }
  func.func @transform_2(%arg0: i32, %arg1: i32) -> (i32, i32) {
    %c0_i32 = arith.constant 0 : i32
    %c0_i32_0 = arith.constant 0 : i32
    %c0_i32_1 = arith.constant 0 : i32
    return %c0_i32, %c0_i32_0 : i32, i32
  }
  func.func @transform_3(%arg0: i32, %arg1: i32) -> (i32, i32) {
    %c0_i32 = arith.constant 0 : i32
    %c0_i32_0 = arith.constant 0 : i32
    %c0_i32_1 = arith.constant 0 : i32
    return %c0_i32, %c0_i32_0 : i32, i32
  }
  func.func @transform_4(%arg0: i32, %arg1: i32) -> (i32, i32, i32) {
    %c0_i32 = arith.constant 0 : i32
    %c0_i32_0 = arith.constant 0 : i32
    return %arg0, %arg1, %c0_i32 : i32, i32, i32
  }
}

</mosaic_0001>

<llo_original>
// kernel: conv1d_block.3
$region0: #{conv1d_block.3}
  #allocation0 [shape = 'u32[]', space=smem, size = 0x4, offset = 0x4, fixed_abs, tag = 'smem constant byte address 0x4 - core index']
  #allocation1 [shape = 'u32[144,128]{1,0:T(1,128)}', space=vmem, size = 0x12000, scoped, tag = 'internal scratch']
  %s0 = inlined_call_operand.vmem [shape: f32[2,16,24], index: 0, kind: input, shape index: {}]
  %s1 = inlined_call_operand.vmem [shape: f32[24,128], index: 1, kind: input, shape index: {}]
  %s2 = inlined_call_operand.vmem [shape: f32[1,128], index: 2, kind: input, shape index: {}]
  %s3 = inlined_call_operand.vmem [shape: f32[1,128], index: 3, kind: input, shape index: {}]
  %s4 = inlined_call_operand.vmem [shape: f32[2,16,128], index: 4, kind: output, shape index: {}]
  %s5 = sld [smem:[#allocation0]]
  $region49: #{conv1d_block.3} parent=0
    _
  %s7 = ssub.s32 1, %s5
  %s8 = scalar_select 0, %s7, %s5
  loop: start=0, step=1, limit=4
  $region2: #{conv1d_block.3} parent=0 // loop_pre_header
    _
  $region3: #{conv1d_block.3} parent=0 // loop_header
    %s10 = sphi 0, %s14
    %p11 = scmp.ge.s32.totalorder %s10, 4
    %s17 = sphi 0, %s29
    %s18 = sphi 0, %s25
    %s19 = sphi 0, %s17
    %s20 = sphi 0, %s18
    %s21 = sphi 0, %s19
    %s22 = sphi 0, %s20
    %s34 = sphi 0, %s36
    %s37 = sphi 0, %s34
    %s38 = sphi 0, %s37
    %s54 = sphi 0, %s38
    %s58 = sphi 0, %s58
    %s60 = sphi 0, %s58
    %s61 = sphi 0, %s60
    %s75 = sphi 0, %s61
    %s79 = sphi 0, %s79
    %s81 = sphi 0, %s79
    %s82 = sphi 0, %s81
    %s96 = sphi 0, %s82
    %s100 = sphi 0, %s100
    %s102 = sphi 0, %s100
    %s103 = sphi 0, %s102
    %s117 = sphi 0, %s103
    %s125 = sphi 0, %s127
    %s128 = sphi 0, %s125
    %s129 = sphi 0, %s128
    %s145 = sphi 0, %s129
  $region4: #{conv1d_block.3} parent=0 // loop_header_branch
    %13 = sbr.rel (%p11) target = $region8
  $region5: #{conv1d_block.3} parent=0 // loop_body
    %s15 = ssub.s32 %s10, 1
    %s16 = ssub.s32 %s10, 2
    %s23 = sadd.s32 1, %s18
    %p24 = scmp.ge.s32.totalorder %s23, 1
    %s25 = scalar_select %p24, 0, %s23
    %s26 = sadd.s32 1, %s17
    %s27 = scalar_select %p24, %s26, %s17
    %p28 = scmp.ge.s32.totalorder %s27, 2
    %s29 = scalar_select %p28, 0, %s27
    %s30 = ssub.s32 %s17, %s29
    %s31 = ssub.s32 %s18, %s25
    %s32 = sor.u32 %s30, %s31
    %p33 = scmp.eq.s32.totalorder %s32, 0
    %s35 = sadd.s32 %s34, 1
    %s36 = scalar_select %p33, %s34, %s35
    %p39 = pneg %p33
    %p40 = scmp.eq.s32.totalorder %s10, 1
    %p41 = por %p39, %p40
    %p42 = scmp.ne.s32.totalorder %s34, %s37
    %p43 = scmp.eq.s32.totalorder %s10, 0
    %p44 = por %p42, %p43
    %p45 = scmp.ne.s32.totalorder %s34, %s37
    %p46 = scmp.eq.s32.totalorder %s15, 1
    %p47 = por %p45, %p46
    %p48 = scmp.ne.s32.totalorder %s37, %s38
    %p49 = scmp.eq.s32.totalorder %s15, 0
    %p50 = por %p48, %p49
    %p51 = scmp.ne.s32.totalorder %s37, %s38
    %p52 = scmp.eq.s32.totalorder %s16, 1
    %p53 = por %p51, %p52
    %p55 = scmp.ne.s32.totalorder %s38, %s54
    %p56 = scmp.eq.s32.totalorder %s16, 0
    %p57 = por %p55, %p56
    %s59 = sadd.s32 %s58, 1
    %p62 = scmp.eq.s32.totalorder %s10, 1
    %p63 = scmp.ne.s32.totalorder %s58, %s60
    %p64 = scmp.eq.s32.totalorder %s10, 0
    %p65 = por %p63, %p64
    %p66 = scmp.ne.s32.totalorder %s58, %s60
    %p67 = scmp.eq.s32.totalorder %s15, 1
    %p68 = por %p66, %p67
    %p69 = scmp.ne.s32.totalorder %s60, %s61
    %p70 = scmp.eq.s32.totalorder %s15, 0
    %p71 = por %p69, %p70
    %p72 = scmp.ne.s32.totalorder %s60, %s61
    %p73 = scmp.eq.s32.totalorder %s16, 1
    %p74 = por %p72, %p73
    %p76 = scmp.ne.s32.totalorder %s61, %s75
    %p77 = scmp.eq.s32.totalorder %s16, 0
    %p78 = por %p76, %p77
    %s80 = sadd.s32 %s79, 1
    %p83 = scmp.eq.s32.totalorder %s10, 1
    %p84 = scmp.ne.s32.totalorder %s79, %s81
    %p85 = scmp.eq.s32.totalorder %s10, 0
    %p86 = por %p84, %p85
    %p87 = scmp.ne.s32.totalorder %s79, %s81
    %p88 = scmp.eq.s32.totalorder %s15, 1
    %p89 = por %p87, %p88
    %p90 = scmp.ne.s32.totalorder %s81, %s82
    %p91 = scmp.eq.s32.totalorder %s15, 0
    %p92 = por %p90, %p91
    %p93 = scmp.ne.s32.totalorder %s81, %s82
    %p94 = scmp.eq.s32.totalorder %s16, 1
    %p95 = por %p93, %p94
    %p97 = scmp.ne.s32.totalorder %s82, %s96
    %p98 = scmp.eq.s32.totalorder %s16, 0
    %p99 = por %p97, %p98
    %s101 = sadd.s32 %s100, 1
    %p104 = scmp.eq.s32.totalorder %s10, 1
    %p105 = scmp.ne.s32.totalorder %s100, %s102
    %p106 = scmp.eq.s32.totalorder %s10, 0
    %p107 = por %p105, %p106
    %p108 = scmp.ne.s32.totalorder %s100, %s102
    %p109 = scmp.eq.s32.totalorder %s15, 1
    %p110 = por %p108, %p109
    %p111 = scmp.ne.s32.totalorder %s102, %s103
    %p112 = scmp.eq.s32.totalorder %s15, 0
    %p113 = por %p111, %p112
    %p114 = scmp.ne.s32.totalorder %s102, %s103
    %p115 = scmp.eq.s32.totalorder %s16, 1
    %p116 = por %p114, %p115
    %p118 = scmp.ne.s32.totalorder %s103, %s117
    %p119 = scmp.eq.s32.totalorder %s16, 0
    %p120 = por %p118, %p119
    %s121 = ssub.s32 %s17, %s29
    %s122 = ssub.s32 %s18, %s25
    %s123 = sor.u32 %s121, %s122
    %p124 = scmp.eq.s32.totalorder %s123, 0
    %s126 = sadd.s32 %s125, 1
    %s127 = scalar_select %p124, %s125, %s126
    %p130 = pneg %p124
    %p131 = scmp.eq.s32.totalorder %s10, 1
    %p132 = por %p130, %p131
    %p133 = scmp.ne.s32.totalorder %s125, %s128
    %p134 = scmp.eq.s32.totalorder %s10, 0
    %p135 = por %p133, %p134
    %p136 = scmp.ne.s32.totalorder %s125, %s128
    %p137 = scmp.eq.s32.totalorder %s15, 1
    %p138 = por %p136, %p137
    %p139 = scmp.ne.s32.totalorder %s128, %s129
    %p140 = scmp.eq.s32.totalorder %s15, 0
    %p141 = por %p139, %p140
    %p142 = scmp.ne.s32.totalorder %s128, %s129
    %p143 = scmp.eq.s32.totalorder %s16, 1
    %p144 = por %p142, %p143
    %p146 = scmp.ne.s32.totalorder %s129, %s145
    %p147 = scmp.eq.s32.totalorder %s16, 0
    %p148 = por %p146, %p147
    %p149 = scmp.le.s32.totalorder 1, %s10
    %p150 = scmp.lt.s32.totalorder %s10, 3
    %p151 = pnand %p149, %p150
    %p152 = pneg %p151
    // Predicated region
    $region9: #{conv1d_block.3} parent=5 // pred_check
      _
    $region10: #{conv1d_block.3} parent=5 // pred_check_branch
      %154 = sbr.rel (%p151) target = $region12
    $region11: #{conv1d_block.3} parent=5 // pred_region
      %s155 = ssub.s32 %s10, 1
      // Predicated region
      $region13: #{conv1d_block.3} parent=11 // pred_check
        %p156 = pneg %p71
      $region14: #{conv1d_block.3} parent=11 // pred_check_branch
        %158 = sbr.rel (%p156) target = $region16
      $region15: #{conv1d_block.3} parent=11 // pred_region
        _
      $region16: #{conv1d_block.3} parent=11 // pred_fallthru
        _
      // Predicated region
      $region17: #{conv1d_block.3} parent=11 // pred_check
        %p159 = pneg %p92
      $region18: #{conv1d_block.3} parent=11 // pred_check_branch
        %161 = sbr.rel (%p159) target = $region20
      $region19: #{conv1d_block.3} parent=11 // pred_region
        _
      $region20: #{conv1d_block.3} parent=11 // pred_fallthru
        _
      // Predicated region
      $region21: #{conv1d_block.3} parent=11 // pred_check
        %p162 = pneg %p113
      $region22: #{conv1d_block.3} parent=11 // pred_check_branch
        %164 = sbr.rel (%p162) target = $region24
      $region23: #{conv1d_block.3} parent=11 // pred_region
        _
      $region24: #{conv1d_block.3} parent=11 // pred_fallthru
        _
    $region12: #{conv1d_block.3} parent=5 // pred_fallthru
      _
    %p165 = scmp.lt.s32.totalorder %s10, 2
    // Predicated region
    $region25: #{conv1d_block.3} parent=5 // pred_check
      %p166 = pneg %p165
    $region26: #{conv1d_block.3} parent=5 // pred_check_branch
      %168 = sbr.rel (%p166) target = $region28
    $region27: #{conv1d_block.3} parent=5 // pred_region
      // Predicated region
      $region29: #{conv1d_block.3} parent=27 // pred_check
        %p169 = pneg %p44
      $region30: #{conv1d_block.3} parent=27 // pred_check_branch
        %171 = sbr.rel (%p169) target = $region32
      $region31: #{conv1d_block.3} parent=27 // pred_region
        %s172 = smul.u32 2, %s18
        %p173 = scmp.lt.s32.totalorder %s17, 1
        %s174 = scalar_select %p173, %s17, 1
        %p175 = scmp.lt.s32.totalorder %s172, 1
        %s176 = scalar_select %p175, %s172, 1
        %s177 = smul.addr %s174, 2
        %s178 = sadd.s32 %s176, %s177
        %s179 = smul.addr %s178, 8
        %s180 = scalar_lea.vmem %s0, %s179
        %s181 = smul.u32 2, %s18
      $region32: #{conv1d_block.3} parent=27 // pred_fallthru
        _
    $region28: #{conv1d_block.3} parent=5 // pred_fallthru
      _
    %p182 = scmp.le.s32.totalorder 1, %s10
    %p183 = scmp.lt.s32.totalorder %s10, 3
    %p184 = pnand %p182, %p183
    %p185 = pneg %p184
    // Predicated region
    $region33: #{conv1d_block.3} parent=5 // pred_check
      _
    $region34: #{conv1d_block.3} parent=5 // pred_check_branch
      %187 = sbr.rel (%p184) target = $region36
    $region35: #{conv1d_block.3} parent=5 // pred_region
      %s188 = ssub.s32 %s10, 1
      %s189 = smul.u32 2, %s20
      %p190 = scmp.lt.s32.totalorder %s19, 1
      %s191 = scalar_select %p190, %s19, 1
      %p192 = scmp.lt.s32.totalorder %s189, 1
      %s193 = scalar_select %p192, %s189, 1
      %s194 = smul.addr %s191, 2
      %s195 = sadd.s32 %s193, %s194
      %s196 = smul.addr %s195, 8
      %s197 = scalar_lea.vmem %s0, %s196
      %p198 = pneg %p50
      %p199 = pneg %p47
      %p200 = pneg %p71
      %p201 = pneg %p68
      %p202 = pneg %p92
      %p203 = pneg %p89
      %p204 = pneg %p113
      %p205 = pneg %p110
      %p206 = pneg %p141
      %p207 = pneg %p138
      %s208 = smul.u32 2, %s20
      %p209 = scmp.lt.s32.totalorder %s19, 1
      %s210 = scalar_select %p209, %s19, 1
      %p211 = scmp.lt.s32.totalorder %s208, 1
      %s212 = scalar_select %p211, %s208, 1
      %s213 = smul.addr %s210, 2
      %s214 = sadd.s32 %s212, %s213
      %s215 = smul.addr %s214, 8
      %s216 = scalar_lea.vmem %s4, %s215
      %s217 = smul.u32 2, %s20
      %p218 = scmp.lt.s32.totalorder %s19, 1
      %s219 = scalar_select %p218, %s19, 1
      %p220 = scmp.lt.s32.totalorder %s217, 1
      %s221 = scalar_select %p220, %s217, 1
      %s222 = smul.addr %s219, 2
      %s223 = sadd.s32 %s221, %s222
      %s224 = smul.addr %s223, 8
      %s225 = scalar_lea.vmem %s0, %s224
      %s226 = smul.u32 2, %s20
      %s227 = smul.u32 2, %s20
      %p228 = scmp.lt.s32.totalorder %s19, 1
      %s229 = scalar_select %p228, %s19, 1
      %p230 = scmp.lt.s32.totalorder %s227, 1
      %s231 = scalar_select %p230, %s227, 1
      %s232 = smul.addr %s229, 2
      %s233 = sadd.s32 %s231, %s232
      %s234 = smul.addr %s233, 8
      %s235 = scalar_lea.vmem %s4, %s234
      %s236 = smul.u32 2, %s20
      %v237 = vld [vmem:[%s225] sm:$0xff]
      %v238 = vld [vmem:[%s225 + $0x8] sm:$0xff]
      %v239 = vld [vmem:[%s1] sm:$0xff]
      %v240 = vld [vmem:[%s1 + $0x8] sm:$0xff]
      %v241 = vld [vmem:[%s1 + $0x10] sm:$0xff]
      %vm242 = vcmask 195584
      %v244 = vsel %vm242, %v237, 0
      %v247 = vsel %vm242, %v238, 0
      %249 = vmatprep.subr.mxu0 0.0
      %250 = vmatpush1.msra.mxu0 0.0
      %251 = vmatprep.subr.mxu0 0.0
      %252 = vmatpush1.msra.mxu0 0.0
      %253 = vmatprep.subr.mxu0 0.0
      %254 = vmatpush1.msra.mxu0 0.0
      %255 = vmatprep.subr.mxu0 0.0
      %256 = vmatpush1.msra.mxu0 0.0
      %257 = vmatprep.subr.mxu0 0.0
      %258 = vmatpush1.msra.mxu0 0.0
      %259 = vmatprep.subr.mxu0 0.0
      %260 = vmatpush1.msra.mxu0 0.0
      %261 = vmatprep.subr.mxu0 0.0
      %262 = vmatpush1.msra.mxu0 0.0
      %263 = vmatprep.subr.mxu0 0.0
      %264 = vmatpush1.msra.mxu0 0.0
      %265 = vmatprep.subr.mxu0 0.0
      %266 = vmatpush1.msra.mxu0 0.0
      %267 = vmatprep.subr.mxu0 0.0
      %268 = vmatpush1.msra.mxu0 0.0
      %269 = vmatprep.subr.mxu0 0.0
      %270 = vmatpush1.msra.mxu0 0.0
      %271 = vmatprep.subr.mxu0 0.0
      %272 = vmatpush1.msra.mxu0 0.0
      %273 = vmatprep.subr.mxu0 0.0
      %274 = vmatpush1.msra.mxu0 0.0
      %275 = vmatprep.subr.mxu0 0.0
      %276 = vmatpush1.msra.mxu0 %v241
      %277 = vmatprep.subr.mxu0 0.0
      %278 = vmatpush1.msra.mxu0 %v240
      %279 = vmatprep.subr.mxu0 0.0
      %280 = vmatpush1.msra.mxu0 %v239
      %281 = vmatprep.subr.mxu0 0.0
      %282 = vmatpush2.msra.mxu0 0.0
      %283 = vmatprep.subr.mxu0 0.0
      %284 = vmatpush2.msra.mxu0 0.0
      %285 = vmatprep.subr.mxu0 0.0
      %286 = vmatpush2.msra.mxu0 0.0
      %287 = vmatprep.subr.mxu0 0.0
      %288 = vmatpush2.msra.mxu0 0.0
      %289 = vmatprep.subr.mxu0 0.0
      %290 = vmatpush2.msra.mxu0 0.0
      %291 = vmatprep.subr.mxu0 0.0
      %292 = vmatpush2.msra.mxu0 0.0
      %293 = vmatprep.subr.mxu0 0.0
      %294 = vmatpush2.msra.mxu0 0.0
      %295 = vmatprep.subr.mxu0 0.0
      %296 = vmatpush2.msra.mxu0 0.0
      %297 = vmatprep.subr.mxu0 0.0
      %298 = vmatpush2.msra.mxu0 0.0
      %299 = vmatprep.subr.mxu0 0.0
      %300 = vmatpush2.msra.mxu0 0.0
      %301 = vmatprep.subr.mxu0 0.0
      %302 = vmatpush2.msra.mxu0 0.0
      %303 = vmatprep.subr.mxu0 0.0
      %304 = vmatpush2.msra.mxu0 0.0
      %305 = vmatprep.subr.mxu0 0.0
      %306 = vmatpush2.msra.mxu0 0.0
      %307 = vmatprep.subr.mxu0 0.0
      %308 = vmatpush2.msra.mxu0 0.0
      %309 = vmatprep.subr.mxu0 0.0
      %310 = vmatpush2.msra.mxu0 0.0
      %311 = vmatprep.subr.mxu0 0.0
      %312 = vmatpush2.msra.mxu0 0.0
      %313 = vmatprep.mubr.f32.mxu0 0.0
      %314 = vmatmul.mubr.f32.gmra.mxu0 %v244
      %v315 = vpop.f32.mrf.mxu0
      %v316 = vadd.f32 0.0, %v315
      %v317 = vpop.f32.mrf.mxu0
      %318 = vmatprep.mubr.f32.mxu0 0.0
      %319 = vmatmul.mubr.f32.gmra.mxu0 %v247
      %v320 = vpop.f32.mrf.mxu0
      %v321 = vadd.f32 0.0, %v320
      %v322 = vpop.f32.mrf.mxu0
      %323 = vdwg.mxu0
      %v324 = vld [vmem:[%s2] sm:$0x1]
      %v326 = vlaneseq
      %v327 = vshrl.u32 %v326, 7
      %v328 = vsub.s32 0, %v327
      %v329 = vrot.slane %v324, %v328
      %v331 = vmul.f32 %v316, %v329
      %v332 = vmul.f32 %v321, %v329
      %v333 = vld [vmem:[%s3] sm:$0x1]
      %v335 = vlaneseq
      %v336 = vshrl.u32 %v335, 7
      %v337 = vsub.s32 0, %v336
      %v338 = vrot.slane %v333, %v337
      %v340 = vadd.f32 %v331, %v338
      %v341 = vadd.f32 %v332, %v338
      %v342 = vmax.f32 %v340, 0.0
      %v343 = vmax.f32 %v341, 0.0
      %344 = vst [vmem:[%s235] sm:$0xff] %v342
      %345 = vst [vmem:[%s235 + $0x8] sm:$0xff] %v343
      %s346 = smul.u32 2, %s20
      %p347 = scmp.lt.s32.totalorder %s19, 1
      %s348 = scalar_select %p347, %s19, 1
      %p349 = scmp.lt.s32.totalorder %s346, 1
      %s350 = scalar_select %p349, %s346, 1
      %s351 = smul.addr %s348, 2
      %s352 = sadd.s32 %s350, %s351
      %s353 = smul.addr %s352, 8
      %s354 = scalar_lea.vmem %s4, %s353
      // Predicated region
      $region37: #{conv1d_block.3} parent=35 // pred_check
        %p355 = pneg %p138
      $region38: #{conv1d_block.3} parent=35 // pred_check_branch
        %357 = sbr.rel (%p355) target = $region40
      $region39: #{conv1d_block.3} parent=35 // pred_region
        %s358 = smul.u32 2, %s20
      $region40: #{conv1d_block.3} parent=35 // pred_fallthru
        _
    $region36: #{conv1d_block.3} parent=5 // pred_fallthru
      _
    %p359 = scmp.le.s32.totalorder 2, %s10
    // Predicated region
    $region41: #{conv1d_block.3} parent=5 // pred_check
      %p360 = pneg %p359
    $region42: #{conv1d_block.3} parent=5 // pred_check_branch
      %362 = sbr.rel (%p360) target = $region44
    $region43: #{conv1d_block.3} parent=5 // pred_region
      %s363 = ssub.s32 %s10, 2
      // Predicated region
      $region45: #{conv1d_block.3} parent=43 // pred_check
        %p364 = pneg %p144
      $region46: #{conv1d_block.3} parent=43 // pred_check_branch
        %366 = sbr.rel (%p364) target = $region48
      $region47: #{conv1d_block.3} parent=43 // pred_region
        %s367 = smul.u32 2, %s22
        %p368 = scmp.lt.s32.totalorder %s21, 1
        %s369 = scalar_select %p368, %s21, 1
        %p370 = scmp.lt.s32.totalorder %s367, 1
        %s371 = scalar_select %p370, %s367, 1
        %s372 = smul.addr %s369, 2
        %s373 = sadd.s32 %s371, %s372
        %s374 = smul.addr %s373, 8
        %s375 = scalar_lea.vmem %s4, %s374
      $region48: #{conv1d_block.3} parent=43 // pred_fallthru
        _
    $region44: #{conv1d_block.3} parent=5 // pred_fallthru
      _
  $region6: #{conv1d_block.3} parent=0 // loop_footer
    %s14 = sadd.s32 1, %s10
  $region7: #{conv1d_block.3} parent=0 // loop_footer_branch
    %9 = sbr.rel target = $region3
  $region8: #{conv1d_block.3} parent=0 // loop_exit
    _

// kernel: conv1d_block.2
$region0: #{conv1d_block.2}
  #allocation0 [shape = 'u32[]', space=smem, size = 0x4, offset = 0x4, fixed_abs, tag = 'smem constant byte address 0x4 - core index']
  #allocation1 [shape = 'u32[144,128]{1,0:T(1,128)}', space=vmem, size = 0x12000, scoped, tag = 'internal scratch']
  %s0 = inlined_call_operand.vmem [shape: f32[2,16,24], index: 0, kind: input, shape index: {}]
  %s1 = inlined_call_operand.vmem [shape: f32[24,128], index: 1, kind: input, shape index: {}]
  %s2 = inlined_call_operand.vmem [shape: f32[2,1,128], index: 2, kind: output, shape index: {0}]
  %s3 = inlined_call_operand.vmem [shape: f32[2,1,128], index: 3, kind: output, shape index: {1}]
  %4 = xla_tuple %s2, %s3
  %s5 = sld [smem:[#allocation0]]
  $region53: #{conv1d_block.2} parent=0
    _
  %s7 = ssub.s32 1, %s5
  %s8 = scalar_select 0, %s7, %s5
  loop: start=0, step=1, limit=4
  $region2: #{conv1d_block.2} parent=0 // loop_pre_header
    _
  $region3: #{conv1d_block.2} parent=0 // loop_header
    %s10 = sphi 0, %s14
    %p11 = scmp.ge.s32.totalorder %s10, 4
    %s17 = sphi 0, %s29
    %s18 = sphi 0, %s25
    %s19 = sphi 0, %s17
    %s20 = sphi 0, %s18
    %s21 = sphi 0, %s19
    %s22 = sphi 0, %s20
    %s34 = sphi 0, %s36
    %s37 = sphi 0, %s34
    %s38 = sphi 0, %s37
    %s54 = sphi 0, %s38
    %s58 = sphi 0, %s58
    %s60 = sphi 0, %s58
    %s61 = sphi 0, %s60
    %s75 = sphi 0, %s61
    %s81 = sphi 0, %s83
    %s84 = sphi 0, %s81
    %s85 = sphi 0, %s84
    %s101 = sphi 0, %s85
    %s107 = sphi 0, %s109
    %s110 = sphi 0, %s107
    %s111 = sphi 0, %s110
    %s127 = sphi 0, %s111
  $region4: #{conv1d_block.2} parent=0 // loop_header_branch
    %13 = sbr.rel (%p11) target = $region8
  $region5: #{conv1d_block.2} parent=0 // loop_body
    %s15 = ssub.s32 %s10, 1
    %s16 = ssub.s32 %s10, 2
    %s23 = sadd.s32 1, %s18
    %p24 = scmp.ge.s32.totalorder %s23, 1
    %s25 = scalar_select %p24, 0, %s23
    %s26 = sadd.s32 1, %s17
    %s27 = scalar_select %p24, %s26, %s17
    %p28 = scmp.ge.s32.totalorder %s27, 2
    %s29 = scalar_select %p28, 0, %s27
    %s30 = ssub.s32 %s17, %s29
    %s31 = ssub.s32 %s18, %s25
    %s32 = sor.u32 %s30, %s31
    %p33 = scmp.eq.s32.totalorder %s32, 0
    %s35 = sadd.s32 %s34, 1
    %s36 = scalar_select %p33, %s34, %s35
    %p39 = pneg %p33
    %p40 = scmp.eq.s32.totalorder %s10, 1
    %p41 = por %p39, %p40
    %p42 = scmp.ne.s32.totalorder %s34, %s37
    %p43 = scmp.eq.s32.totalorder %s10, 0
    %p44 = por %p42, %p43
    %p45 = scmp.ne.s32.totalorder %s34, %s37
    %p46 = scmp.eq.s32.totalorder %s15, 1
    %p47 = por %p45, %p46
    %p48 = scmp.ne.s32.totalorder %s37, %s38
    %p49 = scmp.eq.s32.totalorder %s15, 0
    %p50 = por %p48, %p49
    %p51 = scmp.ne.s32.totalorder %s37, %s38
    %p52 = scmp.eq.s32.totalorder %s16, 1
    %p53 = por %p51, %p52
    %p55 = scmp.ne.s32.totalorder %s38, %s54
    %p56 = scmp.eq.s32.totalorder %s16, 0
    %p57 = por %p55, %p56
    %s59 = sadd.s32 %s58, 1
    %p62 = scmp.eq.s32.totalorder %s10, 1
    %p63 = scmp.ne.s32.totalorder %s58, %s60
    %p64 = scmp.eq.s32.totalorder %s10, 0
    %p65 = por %p63, %p64
    %p66 = scmp.ne.s32.totalorder %s58, %s60
    %p67 = scmp.eq.s32.totalorder %s15, 1
    %p68 = por %p66, %p67
    %p69 = scmp.ne.s32.totalorder %s60, %s61
    %p70 = scmp.eq.s32.totalorder %s15, 0
    %p71 = por %p69, %p70
    %p72 = scmp.ne.s32.totalorder %s60, %s61
    %p73 = scmp.eq.s32.totalorder %s16, 1
    %p74 = por %p72, %p73
    %p76 = scmp.ne.s32.totalorder %s61, %s75
    %p77 = scmp.eq.s32.totalorder %s16, 0
    %p78 = por %p76, %p77
    %s79 = ssub.s32 %s17, %s29
    %p80 = scmp.eq.s32.totalorder %s79, 0
    %s82 = sadd.s32 %s81, 1
    %s83 = scalar_select %p80, %s81, %s82
    %p86 = pneg %p80
    %p87 = scmp.eq.s32.totalorder %s10, 1
    %p88 = por %p86, %p87
    %p89 = scmp.ne.s32.totalorder %s81, %s84
    %p90 = scmp.eq.s32.totalorder %s10, 0
    %p91 = por %p89, %p90
    %p92 = scmp.ne.s32.totalorder %s81, %s84
    %p93 = scmp.eq.s32.totalorder %s15, 1
    %p94 = por %p92, %p93
    %p95 = scmp.ne.s32.totalorder %s84, %s85
    %p96 = scmp.eq.s32.totalorder %s15, 0
    %p97 = por %p95, %p96
    %p98 = scmp.ne.s32.totalorder %s84, %s85
    %p99 = scmp.eq.s32.totalorder %s16, 1
    %p100 = por %p98, %p99
    %p102 = scmp.ne.s32.totalorder %s85, %s101
    %p103 = scmp.eq.s32.totalorder %s16, 0
    %p104 = por %p102, %p103
    %s105 = ssub.s32 %s17, %s29
    %p106 = scmp.eq.s32.totalorder %s105, 0
    %s108 = sadd.s32 %s107, 1
    %s109 = scalar_select %p106, %s107, %s108
    %p112 = pneg %p106
    %p113 = scmp.eq.s32.totalorder %s10, 1
    %p114 = por %p112, %p113
    %p115 = scmp.ne.s32.totalorder %s107, %s110
    %p116 = scmp.eq.s32.totalorder %s10, 0
    %p117 = por %p115, %p116
    %p118 = scmp.ne.s32.totalorder %s107, %s110
    %p119 = scmp.eq.s32.totalorder %s15, 1
    %p120 = por %p118, %p119
    %p121 = scmp.ne.s32.totalorder %s110, %s111
    %p122 = scmp.eq.s32.totalorder %s15, 0
    %p123 = por %p121, %p122
    %p124 = scmp.ne.s32.totalorder %s110, %s111
    %p125 = scmp.eq.s32.totalorder %s16, 1
    %p126 = por %p124, %p125
    %p128 = scmp.ne.s32.totalorder %s111, %s127
    %p129 = scmp.eq.s32.totalorder %s16, 0
    %p130 = por %p128, %p129
    %p131 = scmp.le.s32.totalorder 1, %s10
    %p132 = scmp.lt.s32.totalorder %s10, 3
    %p133 = pnand %p131, %p132
    %p134 = pneg %p133
    // Predicated region
    $region9: #{conv1d_block.2} parent=5 // pred_check
      _
    $region10: #{conv1d_block.2} parent=5 // pred_check_branch
      %136 = sbr.rel (%p133) target = $region12
    $region11: #{conv1d_block.2} parent=5 // pred_region
      %s137 = ssub.s32 %s10, 1
      // Predicated region
      $region13: #{conv1d_block.2} parent=11 // pred_check
        %p138 = pneg %p71
      $region14: #{conv1d_block.2} parent=11 // pred_check_branch
        %140 = sbr.rel (%p138) target = $region16
      $region15: #{conv1d_block.2} parent=11 // pred_region
        _
      $region16: #{conv1d_block.2} parent=11 // pred_fallthru
        _
    $region12: #{conv1d_block.2} parent=5 // pred_fallthru
      _
    %p141 = scmp.lt.s32.totalorder %s10, 2
    // Predicated region
    $region17: #{conv1d_block.2} parent=5 // pred_check
      %p142 = pneg %p141
    $region18: #{conv1d_block.2} parent=5 // pred_check_branch
      %144 = sbr.rel (%p142) target = $region20
    $region19: #{conv1d_block.2} parent=5 // pred_region
      // Predicated region
      $region21: #{conv1d_block.2} parent=19 // pred_check
        %p145 = pneg %p44
      $region22: #{conv1d_block.2} parent=19 // pred_check_branch
        %147 = sbr.rel (%p145) target = $region24
      $region23: #{conv1d_block.2} parent=19 // pred_region
        %s148 = smul.u32 2, %s18
        %p149 = scmp.lt.s32.totalorder %s17, 1
        %s150 = scalar_select %p149, %s17, 1
        %p151 = scmp.lt.s32.totalorder %s148, 1
        %s152 = scalar_select %p151, %s148, 1
        %s153 = smul.addr %s150, 2
        %s154 = sadd.s32 %s152, %s153
        %s155 = smul.addr %s154, 8
        %s156 = scalar_lea.vmem %s0, %s155
        %s157 = smul.u32 2, %s18
      $region24: #{conv1d_block.2} parent=19 // pred_fallthru
        _
    $region20: #{conv1d_block.2} parent=5 // pred_fallthru
      _
    %p158 = scmp.le.s32.totalorder 1, %s10
    %p159 = scmp.lt.s32.totalorder %s10, 3
    %p160 = pnand %p158, %p159
    %p161 = pneg %p160
    // Predicated region
    $region25: #{conv1d_block.2} parent=5 // pred_check
      _
    $region26: #{conv1d_block.2} parent=5 // pred_check_branch
      %163 = sbr.rel (%p160) target = $region28
    $region27: #{conv1d_block.2} parent=5 // pred_region
      %s164 = ssub.s32 %s10, 1
      %s165 = smul.u32 2, %s20
      %p166 = scmp.lt.s32.totalorder %s19, 1
      %s167 = scalar_select %p166, %s19, 1
      %p168 = scmp.lt.s32.totalorder %s165, 1
      %s169 = scalar_select %p168, %s165, 1
      %s170 = smul.addr %s167, 2
      %s171 = sadd.s32 %s169, %s170
      %s172 = smul.addr %s171, 8
      %s173 = scalar_lea.vmem %s0, %s172
      %p174 = pneg %p50
      %p175 = pneg %p47
      %p176 = pneg %p71
      %p177 = pneg %p68
      %p178 = pneg %p97
      %p179 = pneg %p94
      %p180 = scmp.lt.s32.totalorder %s19, 1
      %s181 = scalar_select %p180, %s19, 1
      %s182 = scalar_lea.vmem %s2, %s181
      %p183 = pneg %p123
      %p184 = pneg %p120
      %p185 = scmp.lt.s32.totalorder %s19, 1
      %s186 = scalar_select %p185, %s19, 1
      %s187 = scalar_lea.vmem %s3, %s186
      %s188 = smul.u32 2, %s20
      %p189 = scmp.lt.s32.totalorder %s19, 1
      %s190 = scalar_select %p189, %s19, 1
      %p191 = scmp.lt.s32.totalorder %s188, 1
      %s192 = scalar_select %p191, %s188, 1
      %s193 = smul.addr %s190, 2
      %s194 = sadd.s32 %s192, %s193
      %s195 = smul.addr %s194, 8
      %s196 = scalar_lea.vmem %s0, %s195
      %s197 = smul.u32 2, %s20
      %p198 = scmp.lt.s32.totalorder %s19, 1
      %s199 = scalar_select %p198, %s19, 1
      %s200 = scalar_lea.vmem %s2, %s199
      %p201 = scmp.lt.s32.totalorder %s19, 1
      %s202 = scalar_select %p201, %s19, 1
      %s203 = scalar_lea.vmem %s3, %s202
      %p204 = scmp.eq.s32.totalorder %s20, 0
      // Predicated region
      $region29: #{conv1d_block.2} parent=27 // pred_check
        %p205 = pneg %p204
      $region30: #{conv1d_block.2} parent=27 // pred_check_branch
        %207 = sbr.rel (%p205) target = $region32
      $region31: #{conv1d_block.2} parent=27 // pred_region
        %208 = vst [vmem:[%s200] sm:$0x1] 0.0
        %209 = vst [vmem:[%s203] sm:$0x1] 0.0
      $region32: #{conv1d_block.2} parent=27 // pred_fallthru
        _
      %v210 = vld [vmem:[%s196] sm:$0xff]
      %v211 = vld [vmem:[%s196 + $0x8] sm:$0xff]
      %v212 = vld [vmem:[%s1] sm:$0xff]
      %v213 = vld [vmem:[%s1 + $0x8] sm:$0xff]
      %v214 = vld [vmem:[%s1 + $0x10] sm:$0xff]
      %vm215 = vcmask 195584
      %v217 = vsel %vm215, %v210, 0
      %v220 = vsel %vm215, %v211, 0
      %222 = vmatprep.subr.mxu0 0.0
      %223 = vmatpush1.msra.mxu0 0.0
      %224 = vmatprep.subr.mxu0 0.0
      %225 = vmatpush1.msra.mxu0 0.0
      %226 = vmatprep.subr.mxu0 0.0
      %227 = vmatpush1.msra.mxu0 0.0
      %228 = vmatprep.subr.mxu0 0.0
      %229 = vmatpush1.msra.mxu0 0.0
      %230 = vmatprep.subr.mxu0 0.0
      %231 = vmatpush1.msra.mxu0 0.0
      %232 = vmatprep.subr.mxu0 0.0
      %233 = vmatpush1.msra.mxu0 0.0
      %234 = vmatprep.subr.mxu0 0.0
      %235 = vmatpush1.msra.mxu0 0.0
      %236 = vmatprep.subr.mxu0 0.0
      %237 = vmatpush1.msra.mxu0 0.0
      %238 = vmatprep.subr.mxu0 0.0
      %239 = vmatpush1.msra.mxu0 0.0
      %240 = vmatprep.subr.mxu0 0.0
      %241 = vmatpush1.msra.mxu0 0.0
      %242 = vmatprep.subr.mxu0 0.0
      %243 = vmatpush1.msra.mxu0 0.0
      %244 = vmatprep.subr.mxu0 0.0
      %245 = vmatpush1.msra.mxu0 0.0
      %246 = vmatprep.subr.mxu0 0.0
      %247 = vmatpush1.msra.mxu0 0.0
      %248 = vmatprep.subr.mxu0 0.0
      %249 = vmatpush1.msra.mxu0 %v214
      %250 = vmatprep.subr.mxu0 0.0
      %251 = vmatpush1.msra.mxu0 %v213
      %252 = vmatprep.subr.mxu0 0.0
      %253 = vmatpush1.msra.mxu0 %v212
      %254 = vmatprep.subr.mxu0 0.0
      %255 = vmatpush2.msra.mxu0 0.0
      %256 = vmatprep.subr.mxu0 0.0
      %257 = vmatpush2.msra.mxu0 0.0
      %258 = vmatprep.subr.mxu0 0.0
      %259 = vmatpush2.msra.mxu0 0.0
      %260 = vmatprep.subr.mxu0 0.0
      %261 = vmatpush2.msra.mxu0 0.0
      %262 = vmatprep.subr.mxu0 0.0
      %263 = vmatpush2.msra.mxu0 0.0
      %264 = vmatprep.subr.mxu0 0.0
      %265 = vmatpush2.msra.mxu0 0.0
      %266 = vmatprep.subr.mxu0 0.0
      %267 = vmatpush2.msra.mxu0 0.0
      %268 = vmatprep.subr.mxu0 0.0
      %269 = vmatpush2.msra.mxu0 0.0
      %270 = vmatprep.subr.mxu0 0.0
      %271 = vmatpush2.msra.mxu0 0.0
      %272 = vmatprep.subr.mxu0 0.0
      %273 = vmatpush2.msra.mxu0 0.0
      %274 = vmatprep.subr.mxu0 0.0
      %275 = vmatpush2.msra.mxu0 0.0
      %276 = vmatprep.subr.mxu0 0.0
      %277 = vmatpush2.msra.mxu0 0.0
      %278 = vmatprep.subr.mxu0 0.0
      %279 = vmatpush2.msra.mxu0 0.0
      %280 = vmatprep.subr.mxu0 0.0
      %281 = vmatpush2.msra.mxu0 0.0
      %282 = vmatprep.subr.mxu0 0.0
      %283 = vmatpush2.msra.mxu0 0.0
      %284 = vmatprep.subr.mxu0 0.0
      %285 = vmatpush2.msra.mxu0 0.0
      %286 = vmatprep.mubr.f32.mxu0 0.0
      %287 = vmatmul.mubr.f32.gmra.mxu0 %v217
      %v288 = vpop.f32.mrf.mxu0
      %v289 = vadd.f32 0.0, %v288
      %v290 = vpop.f32.mrf.mxu0
      %291 = vmatprep.mubr.f32.mxu0 0.0
      %292 = vmatmul.mubr.f32.gmra.mxu0 %v220
      %v293 = vpop.f32.mrf.mxu0
      %v294 = vadd.f32 0.0, %v293
      %v295 = vpop.f32.mrf.mxu0
      %296 = vdwg.mxu0
      %s297 = smul.u32 %s20, 16
      %v298 = vlaneseq
      %v299 = vshrl.u32 %v298, 7
      %v300 = vadd.s32 %v299, 8
      %v301 = vstv %s297
      %v302 = vadd.s32 %v301, %v299
      %v303 = vadd.s32 %v301, %v300
      %vm304 = vcmp.lt.s32.totalorder %v302, 16
      %vm305 = vcmp.lt.s32.totalorder %v303, 16
      %v306 = vsel %vm304, 1, 0
      %v307 = vsel %vm305, 1, 0
      %vm308 = vcmp.eq.s32.totalorder %v306, 1
      %vm309 = vcmp.eq.s32.totalorder %v307, 1
      %v310 = vsel %vm308, %v289, 0.0
      %v311 = vsel %vm309, %v294, 0.0
      %v312 = vld [vmem:[%s200] sm:$0x1]
      %v313 = vadd.f32 %v310, %v311
      %v314 = vrot.slane %v313, 4
      %v315 = vadd.f32 %v313, %v314
      %v316 = vrot.slane %v315, 2
      %v317 = vadd.f32 %v315, %v316
      %v318 = vrot.slane %v317, 1
      %v319 = vadd.f32 %v317, %v318
      %v320 = vadd.f32 %v312, %v319
      %321 = vst [vmem:[%s200] sm:$0x1] %v320
      %v322 = vld [vmem:[%s203] sm:$0x1]
      %v323 = vmul.f32 %v310, %v310
      %v324 = vmul.f32 %v311, %v311
      %v325 = vadd.f32 %v323, %v324
      %v326 = vrot.slane %v325, 4
      %v327 = vadd.f32 %v325, %v326
      %v328 = vrot.slane %v327, 2
      %v329 = vadd.f32 %v327, %v328
      %v330 = vrot.slane %v329, 1
      %v331 = vadd.f32 %v329, %v330
      %v332 = vadd.f32 %v322, %v331
      %333 = vst [vmem:[%s203] sm:$0x1] %v332
      %p334 = scmp.lt.s32.totalorder %s19, 1
      %s335 = scalar_select %p334, %s19, 1
      %s336 = scalar_lea.vmem %s2, %s335
      %p337 = scmp.lt.s32.totalorder %s19, 1
      %s338 = scalar_select %p337, %s19, 1
      %s339 = scalar_lea.vmem %s3, %s338
      // Predicated region
      $region33: #{conv1d_block.2} parent=27 // pred_check
        %p340 = pneg %p94
      $region34: #{conv1d_block.2} parent=27 // pred_check_branch
        %342 = sbr.rel (%p340) target = $region36
      $region35: #{conv1d_block.2} parent=27 // pred_region
        _
      $region36: #{conv1d_block.2} parent=27 // pred_fallthru
        _
      // Predicated region
      $region37: #{conv1d_block.2} parent=27 // pred_check
        %p343 = pneg %p120
      $region38: #{conv1d_block.2} parent=27 // pred_check_branch
        %345 = sbr.rel (%p343) target = $region40
      $region39: #{conv1d_block.2} parent=27 // pred_region
        _
      $region40: #{conv1d_block.2} parent=27 // pred_fallthru
        _
    $region28: #{conv1d_block.2} parent=5 // pred_fallthru
      _
    %p346 = scmp.le.s32.totalorder 2, %s10
    // Predicated region
    $region41: #{conv1d_block.2} parent=5 // pred_check
      %p347 = pneg %p346
    $region42: #{conv1d_block.2} parent=5 // pred_check_branch
      %349 = sbr.rel (%p347) target = $region44
    $region43: #{conv1d_block.2} parent=5 // pred_region
      %s350 = ssub.s32 %s10, 2
      // Predicated region
      $region45: #{conv1d_block.2} parent=43 // pred_check
        %p351 = pneg %p100
      $region46: #{conv1d_block.2} parent=43 // pred_check_branch
        %353 = sbr.rel (%p351) target = $region48
      $region47: #{conv1d_block.2} parent=43 // pred_region
        %p354 = scmp.lt.s32.totalorder %s21, 1
        %s355 = scalar_select %p354, %s21, 1
        %s356 = scalar_lea.vmem %s2, %s355
      $region48: #{conv1d_block.2} parent=43 // pred_fallthru
        _
      // Predicated region
      $region49: #{conv1d_block.2} parent=43 // pred_check
        %p357 = pneg %p126
      $region50: #{conv1d_block.2} parent=43 // pred_check_branch
        %359 = sbr.rel (%p357) target = $region52
      $region51: #{conv1d_block.2} parent=43 // pred_region
        %p360 = scmp.lt.s32.totalorder %s21, 1
        %s361 = scalar_select %p360, %s21, 1
        %s362 = scalar_lea.vmem %s3, %s361
      $region52: #{conv1d_block.2} parent=43 // pred_fallthru
        _
    $region44: #{conv1d_block.2} parent=5 // pred_fallthru
      _
  $region6: #{conv1d_block.2} parent=0 // loop_footer
    %s14 = sadd.s32 1, %s10
  $region7: #{conv1d_block.2} parent=0 // loop_footer_branch
    %9 = sbr.rel target = $region3
  $region8: #{conv1d_block.2} parent=0 // loop_exit
    _

</llo_original>
